<compile_context>
chip_gen: v6e
topology: v6e:2x2x1
jax: 0.10.0
libtpu: 0.0.40
codegen_flags: <defaults>
</compile_context>

<pallas_src>
import functools

import jax
import jax.numpy as jnp
from jax.experimental import pallas as pl
from jax.experimental.pallas import tpu as pltpu


# -----------------------------------------------------------------------------
# Fused kernel: grid = (n_ops, 2, n_tiles)
#   phase 0: y = W_p @ P_tile  -> VMEM y scratch, accumulate sum / sum^2
#   phase 1: scale/shift from batch stats, normalize + ReLU, weighted add into
#            the cross-path accumulator; last path emits the output tile.
# -----------------------------------------------------------------------------
def _supernet_kernel(w_ref, p_ref, g_ref, b_ref, opw_ref, o_ref,
                     y_sc, acc_sc, sum_sc, ssq_sc, scale_sc, shift_sc,
                     *, n_ops, tm, count, eps):
    path = pl.program_id(0)
    ph = pl.program_id(1)
    i = pl.program_id(2)
    col = pl.multiple_of(i * tm, tm)

    # Zero the cross-path output accumulator once (very first grid step).
    @pl.when((path == 0) & (ph == 0) & (i == 0))
    def _():
        acc_sc[...] = jnp.zeros_like(acc_sc)

    # Per path: zero the BN-stat accumulators at the start of phase 0.
    @pl.when((ph == 0) & (i == 0))
    def _():
        sum_sc[...] = jnp.zeros_like(sum_sc)
        ssq_sc[...] = jnp.zeros_like(ssq_sc)

    # Phase 0: conv matmul (lane-dense (Cout, tm) result) + per-channel stats.
    @pl.when(ph == 0)
    def _():
        y = jnp.dot(w_ref[...], p_ref[...], preferred_element_type=jnp.float32)
        y_sc[:, pl.ds(col, tm)] = y
        sum_sc[...] += jnp.sum(y, axis=1, keepdims=True)
        ssq_sc[...] += jnp.sum(y * y, axis=1, keepdims=True)

    # Phase 1, first tile: fold batch stats into per-channel scale/shift.
    @pl.when((ph == 1) & (i == 0))
    def _():
        inv_count = jnp.float32(1.0 / count)
        mean = sum_sc[...] * inv_count
        var = jnp.maximum(ssq_sc[...] * inv_count - mean * mean, 0.0)
        inv_std = jax.lax.rsqrt(var + jnp.float32(eps))
        scale = g_ref[...] * inv_std
        scale_sc[...] = scale
        shift_sc[...] = b_ref[...] - mean * scale

    # Phase 1: normalize + ReLU + weighted accumulate across paths.
    @pl.when(ph == 1)
    def _():
        y = y_sc[:, pl.ds(col, tm)]
        z = jnp.maximum(y * scale_sc[...] + shift_sc[...], 0.0)
        acc_sc[:, pl.ds(col, tm)] += opw_ref[...] * z

    # Last path, phase 1: emit the lane-dense output tile.
    @pl.when((path == n_ops - 1) & (ph == 1))
    def _():
        o_ref[...] = acc_sc[:, pl.ds(col, tm)]


def _round_up(a, b):
    return ((a + b - 1) // b) * b


def supernet_layer(x, w, gamma, beta, op_weights, *, stride=1, padding=0,
                   dilation=1, eps=1e-5, tm_max=2048):
    """SupernetLayer forward with ConvBNReLU paths.

    x:          (N, Cin, H, W)           NCHW, like PyTorch
    w:          (n_ops, Cout, Cin, KH, KW)
    gamma,beta: (n_ops, Cout)            BatchNorm2d affine params per path
    op_weights: (n_ops,)                 architecture weights
    """
    n_ops, Cout, Cin_w, KH, KW = w.shape
    N, Cin, H, W = x.shape
    assert Cin_w == Cin, "groups != 1 not supported"

    OH = (H + 2 * padding - dilation * (KH - 1) - 1) // stride + 1
    OW = (W + 2 * padding - dilation * (KW - 1) - 1) // stride + 1
    M = N * OH * OW
    K = Cin * KH * KW

    # Tile size along M (lane dim): single tile when it fits, else tm_max.
    Mp128 = _round_up(M, 128)
    tm = Mp128 if Mp128 <= tm_max else tm_max
    Mp = _round_up(M, tm)
    n_tiles = Mp // tm

    # ---- im2col directly in (K, M) layout (plain-JAX glue) ----
    xp = jnp.pad(x, ((0, 0), (0, 0), (padding, padding), (padding, padding)))
    cols = []
    for kh in range(KH):
        for kw in range(KW):
            sl = xp[:, :,
                    kh * dilation: kh * dilation + (OH - 1) * stride + 1: stride,
                    kw * dilation: kw * dilation + (OW - 1) * stride + 1: stride]
            cols.append(sl)                               # (N, Cin, OH, OW)
    patches = jnp.stack(cols, axis=0)                     # (KH*KW, N, Cin, OH, OW)
    patches = patches.transpose(2, 0, 1, 3, 4)            # (Cin, KH*KW, N, OH, OW)
    patches = patches.reshape(K, M).astype(jnp.float32)   # (K, M)
    if Mp != M:
        patches = jnp.pad(patches, ((0, 0), (0, Mp - M)))  # zero cols -> zero stats

    wmat = w.reshape(n_ops, Cout, K).astype(jnp.float32)      # (n_ops, Cout, K)
    g = gamma.reshape(n_ops, Cout, 1).astype(jnp.float32)
    b = beta.reshape(n_ops, Cout, 1).astype(jnp.float32)
    opw = op_weights.reshape(n_ops, 1, 1).astype(jnp.float32)

    kernel = functools.partial(_supernet_kernel, n_ops=n_ops, tm=tm,
                               count=float(M), eps=float(eps))

    out_t = pl.pallas_call(
        kernel,
        out_shape=jax.ShapeDtypeStruct((Cout, Mp), jnp.float32),
        grid_spec=pltpu.PrefetchScalarGridSpec(
            num_scalar_prefetch=0,
            grid=(n_ops, 2, n_tiles),
            in_specs=[
                # per-path conv weight matrix (Cout, K)
                pl.BlockSpec((None, Cout, K), lambda p_, ph, i: (p_, 0, 0)),
                # im2col patches tile (K, tm); phase 1 pins tile 0 (unused)
                pl.BlockSpec((K, tm), lambda p_, ph, i: (0, i * (1 - ph))),
                # per-path BN gamma / beta as (Cout, 1) columns
                pl.BlockSpec((None, Cout, 1), lambda p_, ph, i: (p_, 0, 0)),
                pl.BlockSpec((None, Cout, 1), lambda p_, ph, i: (p_, 0, 0)),
                # per-path architecture weight as a (1, 1) broadcastable scalar
                pl.BlockSpec((None, 1, 1), lambda p_, ph, i: (p_, 0, 0)),
            ],
            out_specs=pl.BlockSpec(
                (Cout, tm),
                # Output block only advances during the last path's phase 1,
                # so no garbage / duplicate writebacks happen earlier.
                lambda p_, ph, i: (0, jnp.where((p_ == n_ops - 1) & (ph == 1),
                                                i, 0))),
            scratch_shapes=[
                pltpu.VMEM((Cout, Mp), jnp.float32),   # y (conv output, per path)
                pltpu.VMEM((Cout, Mp), jnp.float32),   # cross-path accumulator
                pltpu.VMEM((Cout, 1), jnp.float32),    # per-channel sum
                pltpu.VMEM((Cout, 1), jnp.float32),    # per-channel sum of squares
                pltpu.VMEM((Cout, 1), jnp.float32),    # BN scale
                pltpu.VMEM((Cout, 1), jnp.float32),    # BN shift
            ]),
        compiler_params=pltpu.CompilerParams(
            # phase and path axes carry accumulator deps; tile axis shares the
            # BN-stat scratch -> all sequential.
            dimension_semantics=("arbitrary", "arbitrary", "arbitrary"),
            vmem_limit_bytes=32 * 1024 * 1024),
    )(wmat, patches, g, b, opw)

    # back to NCHW (glue); drop the padded columns.
    out = out_t[:, :M].reshape(Cout, N, OH, OW).transpose(1, 0, 2, 3)
    return out


# -----------------------------------------------------------------------------
# Pure-JAX reference for validation.
# -----------------------------------------------------------------------------
def _reference(x, w, gamma, beta, op_weights, *, stride, padding, dilation,
               eps=1e-5):
    n_ops = w.shape[0]
    out = None
    for p in range(n_ops):
        y = jax.lax.conv_general_dilated(
            x, w[p],
            window_strides=(stride, stride),
            padding=((padding, padding), (padding, padding)),
            rhs_dilation=(dilation, dilation),
            dimension_numbers=("NCHW", "OIHW", "NCHW"))
        mean = jnp.mean(y, axis=(0, 2, 3), keepdims=True)
        var = jnp.mean((y - mean) ** 2, axis=(0, 2, 3), keepdims=True)
        yn = (y - mean) * jax.lax.rsqrt(var + eps)
        yn = yn * gamma[p].reshape(1, -1, 1, 1) + beta[p].reshape(1, -1, 1, 1)
        r = jnp.maximum(yn, 0.0) * op_weights[p]
        out = r if out is None else out + r
    return out


if __name__ == "__main__":
    # SupernetLayer(ConvBNReLU(in=4, out=8, k=3, stride=1, padding=1, relu),
    #               n_ops=3)
    N, Cin, H, W = 2, 4, 16, 16
    Cout, KH, KW = 8, 3, 3
    stride, padding, dilation = 1, 1, 1
    n_ops = 3

    key = jax.random.PRNGKey(0)
    kx, kw, ka = jax.random.split(key, 3)
    x = jax.random.normal(kx, (N, Cin, H, W), dtype=jnp.float32)
    w = jax.random.normal(kw, (n_ops, Cout, Cin, KH, KW), dtype=jnp.float32) * 0.1
    # BatchNorm2d affine params at PyTorch default init: weight=1, bias=0.
    gamma = jnp.ones((n_ops, Cout), dtype=jnp.float32)
    beta = jnp.zeros((n_ops, Cout), dtype=jnp.float32)
    op_weights = jax.nn.softmax(jax.random.normal(ka, (n_ops,), dtype=jnp.float32))

    fn = jax.jit(functools.partial(supernet_layer, stride=stride,
                                   padding=padding, dilation=dilation))
    out = fn(x, w, gamma, beta, op_weights)
    out = jax.block_until_ready(out)

    ref = _reference(x, w, gamma, beta, op_weights, stride=stride,
                     padding=padding, dilation=dilation)
    assert out.shape == (N, Cout, H, W), out.shape
    assert jnp.allclose(out, ref, atol=5e-4, rtol=5e-4), \
        float(jnp.max(jnp.abs(out - ref)))
    print("KERNEL_OK")
</pallas_src>

<mosaic_0001>
module attributes {stable_mosaic.version = 11 : i64} {
  func.func @_supernet_kernel(%arg0: i32, %arg1: i32, %arg2: i32, %arg3: memref<1x8x36xf32, #tpu.memory_space<vmem>>, %arg4: memref<36x512xf32, #tpu.memory_space<vmem>>, %arg5: memref<1x8x1xf32, #tpu.memory_space<vmem>>, %arg6: memref<1x8x1xf32, #tpu.memory_space<vmem>>, %arg7: memref<1x1x1xf32, #tpu.memory_space<vmem>>, %arg8: memref<8x512xf32, #tpu.memory_space<vmem>>, %arg9: memref<8x512xf32, #tpu.memory_space<vmem>>, %arg10: memref<8x512xf32, #tpu.memory_space<vmem>>, %arg11: memref<8x1xf32, #tpu.memory_space<vmem>>, %arg12: memref<8x1xf32, #tpu.memory_space<vmem>>, %arg13: memref<8x1xf32, #tpu.memory_space<vmem>>, %arg14: memref<8x1xf32, #tpu.memory_space<vmem>>) attributes {dimension_semantics = [#tpu.dimension_semantics<arbitrary>, #tpu.dimension_semantics<arbitrary>, #tpu.dimension_semantics<arbitrary>], iteration_bounds = array<i64: 3, 2, 1>, scalar_prefetch = 0 : i64, scratch_operands = 6 : i64, tpu.core_type = #tpu.core_type<tc>, window_params = [{transform_indices = @transform_0, window_bounds = array<i64: 1, 8, 36>}, {transform_indices = @transform_1, window_bounds = array<i64: 36, 512>}, {transform_indices = @transform_2, window_bounds = array<i64: 1, 8, 1>}, {transform_indices = @transform_3, window_bounds = array<i64: 1, 8, 1>}, {transform_indices = @transform_4, window_bounds = array<i64: 1, 1, 1>}, {transform_indices = @transform_5, window_bounds = array<i64: 8, 512>}]} {
    %c512_i32 = arith.constant 512 : i32
    %0 = arith.muli %arg2, %c512_i32 : i32
    %1 = tpu.assume_multiple %0, 512 : i32
    %c0_i32 = arith.constant 0 : i32
    %2 = arith.cmpi eq, %arg0, %c0_i32 : i32
    %c0_i32_0 = arith.constant 0 : i32
    %3 = arith.cmpi eq, %arg1, %c0_i32_0 : i32
    %4 = arith.andi %2, %3 : i1
    %c0_i32_1 = arith.constant 0 : i32
    %5 = arith.cmpi eq, %arg2, %c0_i32_1 : i32
    %6 = arith.andi %4, %5 : i1
    %7 = arith.extui %6 : i1 to i32
    %c0_i32_2 = arith.constant 0 : i32
    %8 = arith.cmpi ne, %7, %c0_i32_2 : i32
    scf.if %8 {
      %cst = arith.constant 0.000000e+00 : f32
      %30 = vector.broadcast %cst : f32 to vector<8x512xf32>
      %c0 = arith.constant 0 : index
      %c0_14 = arith.constant 0 : index
      %31 = vector.load %arg10[%c0, %c0_14] : memref<8x512xf32, #tpu.memory_space<vmem>>, vector<8x512xf32>
      tpu.vector_store %arg10[%c0, %c0_14], %30 {strides = array<i32>} : memref<8x512xf32, #tpu.memory_space<vmem>>, vector<8x512xf32>,
    } else {
    }
    %c0_i32_3 = arith.constant 0 : i32
    %9 = arith.cmpi eq, %arg1, %c0_i32_3 : i32
    %c0_i32_4 = arith.constant 0 : i32
    %10 = arith.cmpi eq, %arg2, %c0_i32_4 : i32
    %11 = arith.andi %9, %10 : i1
    %12 = arith.extui %11 : i1 to i32
    %c0_i32_5 = arith.constant 0 : i32
    %13 = arith.cmpi ne, %12, %c0_i32_5 : i32
    scf.if %13 {
      %cst = arith.constant 0.000000e+00 : f32
      %30 = vector.broadcast %cst : f32 to vector<8x1xf32>
      %c0 = arith.constant 0 : index
      %c0_14 = arith.constant 0 : index
      %31 = vector.load %arg11[%c0, %c0_14] : memref<8x1xf32, #tpu.memory_space<vmem>>, vector<8x1xf32>
      tpu.vector_store %arg11[%c0, %c0_14], %30 {strides = array<i32>} : memref<8x1xf32, #tpu.memory_space<vmem>>, vector<8x1xf32>,
      %cst_15 = arith.constant 0.000000e+00 : f32
      %32 = vector.broadcast %cst_15 : f32 to vector<8x1xf32>
      %c0_16 = arith.constant 0 : index
      %c0_17 = arith.constant 0 : index
      %33 = vector.load %arg12[%c0_16, %c0_17] : memref<8x1xf32, #tpu.memory_space<vmem>>, vector<8x1xf32>
      tpu.vector_store %arg12[%c0_16, %c0_17], %32 {strides = array<i32>} : memref<8x1xf32, #tpu.memory_space<vmem>>, vector<8x1xf32>,
    } else {
    }
    %c0_i32_6 = arith.constant 0 : i32
    %14 = arith.cmpi eq, %arg1, %c0_i32_6 : i32
    %15 = arith.extui %14 : i1 to i32
    %c0_i32_7 = arith.constant 0 : i32
    %16 = arith.cmpi ne, %15, %c0_i32_7 : i32
    scf.if %16 {
      %c0 = arith.constant 0 : index
      %c0_14 = arith.constant 0 : index
      %c0_15 = arith.constant 0 : index
      %30 = vector.load %arg3[%c0, %c0_14, %c0_15] : memref<1x8x36xf32, #tpu.memory_space<vmem>>, vector<1x8x36xf32>
      %31 = vector.shape_cast %30 : vector<1x8x36xf32> to vector<8x36xf32>
      %c0_16 = arith.constant 0 : index
      %c0_17 = arith.constant 0 : index
      %32 = vector.load %arg4[%c0_16, %c0_17] : memref<36x512xf32, #tpu.memory_space<vmem>>, vector<36x512xf32>
      %cst = arith.constant dense<0.000000e+00> : vector<8x512xf32>
      %33 = tpu.matmul %31, %32, %cst {dimension_numbers = #tpu.dot_dimension_numbers<[1], [0], [0], [1], [0, 0, 1, 1], [], []>} : vector<8x36xf32>, vector<36x512xf32>, vector<8x512xf32> -> vector<8x512xf32>
      %c0_18 = arith.constant 0 : index
      %34 = arith.index_cast %1 : i32 to index
      %35 = vector.load %arg9[%c0_18, %34] : memref<8x512xf32, #tpu.memory_space<vmem>>, vector<8x512xf32>
      tpu.vector_store %arg9[%c0_18, %34], %33 {strides = array<i32>} : memref<8x512xf32, #tpu.memory_space<vmem>>, vector<8x512xf32>,
      %c0_19 = arith.constant 0 : index
      %c0_20 = arith.constant 0 : index
      %36 = vector.load %arg11[%c0_19, %c0_20] : memref<8x1xf32, #tpu.memory_space<vmem>>, vector<8x1xf32>
      %cst_21 = arith.constant dense<0.000000e+00> : vector<8xf32>
      %37 = vector.multi_reduction <add>, %33, %cst_21 [1] : vector<8x512xf32> to vector<8xf32>
      %38 = vector.shape_cast %37 : vector<8xf32> to vector<8x1xf32>
      %39 = arith.addf %36, %38 : vector<8x1xf32>
      %c0_22 = arith.constant 0 : index
      %c0_23 = arith.constant 0 : index
      %40 = vector.load %arg11[%c0_22, %c0_23] : memref<8x1xf32, #tpu.memory_space<vmem>>, vector<8x1xf32>
      tpu.vector_store %arg11[%c0_22, %c0_23], %39 {strides = array<i32>} : memref<8x1xf32, #tpu.memory_space<vmem>>, vector<8x1xf32>,
      %c0_24 = arith.constant 0 : index
      %c0_25 = arith.constant 0 : index
      %41 = vector.load %arg12[%c0_24, %c0_25] : memref<8x1xf32, #tpu.memory_space<vmem>>, vector<8x1xf32>
      %42 = arith.mulf %33, %33 : vector<8x512xf32>
      %cst_26 = arith.constant dense<0.000000e+00> : vector<8xf32>
      %43 = vector.multi_reduction <add>, %42, %cst_26 [1] : vector<8x512xf32> to vector<8xf32>
      %44 = vector.shape_cast %43 : vector<8xf32> to vector<8x1xf32>
      %45 = arith.addf %41, %44 : vector<8x1xf32>
      %c0_27 = arith.constant 0 : index
      %c0_28 = arith.constant 0 : index
      %46 = vector.load %arg12[%c0_27, %c0_28] : memref<8x1xf32, #tpu.memory_space<vmem>>, vector<8x1xf32>
      tpu.vector_store %arg12[%c0_27, %c0_28], %45 {strides = array<i32>} : memref<8x1xf32, #tpu.memory_space<vmem>>, vector<8x1xf32>,
    } else {
    }
    %c1_i32 = arith.constant 1 : i32
    %17 = arith.cmpi eq, %arg1, %c1_i32 : i32
    %c0_i32_8 = arith.constant 0 : i32
    %18 = arith.cmpi eq, %arg2, %c0_i32_8 : i32
    %19 = arith.andi %17, %18 : i1
    %20 = arith.extui %19 : i1 to i32
    %c0_i32_9 = arith.constant 0 : i32
    %21 = arith.cmpi ne, %20, %c0_i32_9 : i32
    scf.if %21 {
      %c0 = arith.constant 0 : index
      %c0_14 = arith.constant 0 : index
      %30 = vector.load %arg11[%c0, %c0_14] : memref<8x1xf32, #tpu.memory_space<vmem>>, vector<8x1xf32>
      %cst = arith.constant 0.001953125 : f32
      %31 = vector.broadcast %cst : f32 to vector<8x1xf32>
      %32 = arith.mulf %30, %31 : vector<8x1xf32>
      %c0_15 = arith.constant 0 : index
      %c0_16 = arith.constant 0 : index
      %33 = vector.load %arg12[%c0_15, %c0_16] : memref<8x1xf32, #tpu.memory_space<vmem>>, vector<8x1xf32>
      %cst_17 = arith.constant 0.001953125 : f32
      %34 = vector.broadcast %cst_17 : f32 to vector<8x1xf32>
      %35 = arith.mulf %33, %34 : vector<8x1xf32>
      %36 = arith.mulf %32, %32 : vector<8x1xf32>
      %37 = arith.subf %35, %36 : vector<8x1xf32>
      %cst_18 = arith.constant 0.000000e+00 : f32
      %38 = vector.broadcast %cst_18 : f32 to vector<8x1xf32>
      %39 = arith.maximumf %37, %38 : vector<8x1xf32>
      %cst_19 = arith.constant 9.99999974E-6 : f32
      %40 = vector.broadcast %cst_19 : f32 to vector<8x1xf32>
      %41 = arith.addf %39, %40 : vector<8x1xf32>
      %42 = math.rsqrt %41 : vector<8x1xf32>
      %c0_20 = arith.constant 0 : index
      %c0_21 = arith.constant 0 : index
      %c0_22 = arith.constant 0 : index
      %43 = vector.load %arg5[%c0_20, %c0_21, %c0_22] : memref<1x8x1xf32, #tpu.memory_space<vmem>>, vector<1x8x1xf32>
      %44 = vector.shape_cast %43 : vector<1x8x1xf32> to vector<8x1xf32>
      %45 = arith.mulf %44, %42 : vector<8x1xf32>
      %c0_23 = arith.constant 0 : index
      %c0_24 = arith.constant 0 : index
      %46 = vector.load %arg13[%c0_23, %c0_24] : memref<8x1xf32, #tpu.memory_space<vmem>>, vector<8x1xf32>
      tpu.vector_store %arg13[%c0_23, %c0_24], %45 {strides = array<i32>} : memref<8x1xf32, #tpu.memory_space<vmem>>, vector<8x1xf32>,
      %c0_25 = arith.constant 0 : index
      %c0_26 = arith.constant 0 : index
      %c0_27 = arith.constant 0 : index
      %47 = vector.load %arg6[%c0_25, %c0_26, %c0_27] : memref<1x8x1xf32, #tpu.memory_space<vmem>>, vector<1x8x1xf32>
      %48 = vector.shape_cast %47 : vector<1x8x1xf32> to vector<8x1xf32>
      %49 = arith.mulf %32, %45 : vector<8x1xf32>
      %50 = arith.subf %48, %49 : vector<8x1xf32>
      %c0_28 = arith.constant 0 : index
      %c0_29 = arith.constant 0 : index
      %51 = vector.load %arg14[%c0_28, %c0_29] : memref<8x1xf32, #tpu.memory_space<vmem>>, vector<8x1xf32>
      tpu.vector_store %arg14[%c0_28, %c0_29], %50 {strides = array<i32>} : memref<8x1xf32, #tpu.memory_space<vmem>>, vector<8x1xf32>,
    } else {
    }
    %c1_i32_10 = arith.constant 1 : i32
    %22 = arith.cmpi eq, %arg1, %c1_i32_10 : i32
    %23 = arith.extui %22 : i1 to i32
    %c0_i32_11 = arith.constant 0 : i32
    %24 = arith.cmpi ne, %23, %c0_i32_11 : i32
    scf.if %24 {
      %c0 = arith.constant 0 : index
      %30 = arith.index_cast %1 : i32 to index
      %31 = vector.load %arg9[%c0, %30] : memref<8x512xf32, #tpu.memory_space<vmem>>, vector<8x512xf32>
      %c0_14 = arith.constant 0 : index
      %c0_15 = arith.constant 0 : index
      %32 = vector.load %arg13[%c0_14, %c0_15] : memref<8x1xf32, #tpu.memory_space<vmem>>, vector<8x1xf32>
      %33 = vector.broadcast %32 : vector<8x1xf32> to vector<8x512xf32>
      %34 = arith.mulf %31, %33 : vector<8x512xf32>
      %c0_16 = arith.constant 0 : index
      %c0_17 = arith.constant 0 : index
      %35 = vector.load %arg14[%c0_16, %c0_17] : memref<8x1xf32, #tpu.memory_space<vmem>>, vector<8x1xf32>
      %36 = vector.broadcast %35 : vector<8x1xf32> to vector<8x512xf32>
      %37 = arith.addf %34, %36 : vector<8x512xf32>
      %cst = arith.constant 0.000000e+00 : f32
      %38 = vector.broadcast %cst : f32 to vector<8x512xf32>
      %39 = arith.maximumf %37, %38 : vector<8x512xf32>
      %c0_18 = arith.constant 0 : index
      %40 = arith.index_cast %1 : i32 to index
      %41 = vector.load %arg10[%c0_18, %40] : memref<8x512xf32, #tpu.memory_space<vmem>>, vector<8x512xf32>
      %c0_19 = arith.constant 0 : index
      %c0_20 = arith.constant 0 : index
      %c0_21 = arith.constant 0 : index
      %42 = vector.load %arg7[%c0_19, %c0_20, %c0_21] : memref<1x1x1xf32, #tpu.memory_space<vmem>>, vector<1x1x1xf32>
      %43 = vector.shape_cast %42 : vector<1x1x1xf32> to vector<1x1xf32>
      %44 = vector.broadcast %43 : vector<1x1xf32> to vector<8x512xf32>
      %45 = arith.mulf %44, %39 : vector<8x512xf32>
      %46 = arith.addf %41, %45 : vector<8x512xf32>
      %c0_22 = arith.constant 0 : index
      %47 = arith.index_cast %1 : i32 to index
      %48 = vector.load %arg10[%c0_22, %47] : memref<8x512xf32, #tpu.memory_space<vmem>>, vector<8x512xf32>
      tpu.vector_store %arg10[%c0_22, %47], %46 {strides = array<i32>} : memref<8x512xf32, #tpu.memory_space<vmem>>, vector<8x512xf32>,
    } else {
    }
    %c2_i32 = arith.constant 2 : i32
    %25 = arith.cmpi eq, %arg0, %c2_i32 : i32
    %c1_i32_12 = arith.constant 1 : i32
    %26 = arith.cmpi eq, %arg1, %c1_i32_12 : i32
    %27 = arith.andi %25, %26 : i1
    %28 = arith.extui %27 : i1 to i32
    %c0_i32_13 = arith.constant 0 : i32
    %29 = arith.cmpi ne, %28, %c0_i32_13 : i32
    scf.if %29 {
      %c0 = arith.constant 0 : index
      %30 = arith.index_cast %1 : i32 to index
      %31 = vector.load %arg10[%c0, %30] : memref<8x512xf32, #tpu.memory_space<vmem>>, vector<8x512xf32>
      %c0_14 = arith.constant 0 : index
      %c0_15 = arith.constant 0 : index
      %32 = vector.load %arg8[%c0_14, %c0_15] : memref<8x512xf32, #tpu.memory_space<vmem>>, vector<8x512xf32>
      tpu.vector_store %arg8[%c0_14, %c0_15], %31 {strides = array<i32>} : memref<8x512xf32, #tpu.memory_space<vmem>>, vector<8x512xf32>,
    } else {
    }
    return
  }
  func.func @transform_0(%arg0: i32, %arg1: i32, %arg2: i32) -> (i32, i32, i32) {
    %c0_i32 = arith.constant 0 : i32
    %c0_i32_0 = arith.constant 0 : i32
    %c0_i32_1 = arith.constant 0 : i32
    return %arg0, %c0_i32, %c0_i32_0 : i32, i32, i32
  }
  func.func @transform_1(%arg0: i32, %arg1: i32, %arg2: i32) -> (i32, i32) {
    %c1_i32 = arith.constant 1 : i32
    %0 = arith.subi %c1_i32, %arg1 : i32
    %1 = arith.muli %arg2, %0 : i32
    %c0_i32 = arith.constant 0 : i32
    %c0_i32_0 = arith.constant 0 : i32
    return %c0_i32, %1 : i32, i32
  }
  func.func @transform_2(%arg0: i32, %arg1: i32, %arg2: i32) -> (i32, i32, i32) {
    %c0_i32 = arith.constant 0 : i32
    %c0_i32_0 = arith.constant 0 : i32
    %c0_i32_1 = arith.constant 0 : i32
    return %arg0, %c0_i32, %c0_i32_0 : i32, i32, i32
  }
  func.func @transform_3(%arg0: i32, %arg1: i32, %arg2: i32) -> (i32, i32, i32) {
    %c0_i32 = arith.constant 0 : i32
    %c0_i32_0 = arith.constant 0 : i32
    %c0_i32_1 = arith.constant 0 : i32
    return %arg0, %c0_i32, %c0_i32_0 : i32, i32, i32
  }
  func.func @transform_4(%arg0: i32, %arg1: i32, %arg2: i32) -> (i32, i32, i32) {
    %c0_i32 = arith.constant 0 : i32
    %c0_i32_0 = arith.constant 0 : i32
    %c0_i32_1 = arith.constant 0 : i32
    return %arg0, %c0_i32, %c0_i32_0 : i32, i32, i32
  }
  func.func @transform_5(%arg0: i32, %arg1: i32, %arg2: i32) -> (i32, i32) {
    %c2_i32 = arith.constant 2 : i32
    %0 = arith.cmpi eq, %arg0, %c2_i32 : i32
    %c1_i32 = arith.constant 1 : i32
    %1 = arith.cmpi eq, %arg1, %c1_i32 : i32
    %2 = arith.andi %0, %1 : i1
    %c0_i32 = arith.constant 0 : i32
    %3 = arith.select %2, %arg2, %c0_i32 : i32
    %c0_i32_0 = arith.constant 0 : i32
    %c0_i32_1 = arith.constant 0 : i32
    return %c0_i32_0, %3 : i32, i32
  }
}

</mosaic_0001>

<llo_original>
// kernel: supernet_layer.1
$region0: #{supernet_layer.1}
  #allocation0 [shape = 'u32[]', space=smem, size = 0x4, offset = 0x4, fixed_abs, tag = 'smem constant byte address 0x4 - core index']
  #allocation1 [shape = 'u32[144,128]{1,0:T(1,128)}', space=vmem, size = 0x12000, scoped, tag = 'internal scratch']
  #allocation2 [shape = 'f32[8,512]{1,0:T(8,128)}', space=vmem, size = 0x4000, scoped, tag = 'scratch operand']
  #allocation3 [shape = 'f32[8,512]{1,0:T(8,128)}', space=vmem, size = 0x4000, scoped, tag = 'scratch operand']
  #allocation4 [shape = 'f32[8,1]{1,0:T(8,128)}', space=vmem, size = 0x1000, scoped, tag = 'scratch operand']
  #allocation5 [shape = 'f32[8,1]{1,0:T(8,128)}', space=vmem, size = 0x1000, scoped, tag = 'scratch operand']
  #allocation6 [shape = 'f32[8,1]{1,0:T(8,128)}', space=vmem, size = 0x1000, scoped, tag = 'scratch operand']
  #allocation7 [shape = 'f32[8,1]{1,0:T(8,128)}', space=vmem, size = 0x1000, scoped, tag = 'scratch operand']
  %s0 = inlined_call_operand.vmem [shape: f32[3,8,36], index: 0, kind: input, shape index: {}]
  %s1 = inlined_call_operand.vmem [shape: f32[36,512], index: 1, kind: input, shape index: {}]
  %s2 = inlined_call_operand.vmem [shape: f32[3,8,1], index: 2, kind: input, shape index: {}]
  %s3 = inlined_call_operand.vmem [shape: f32[3,8,1], index: 3, kind: input, shape index: {}]
  %s4 = inlined_call_operand.vmem [shape: f32[3,1,1], index: 4, kind: input, shape index: {}]
  %s5 = inlined_call_operand.vmem [shape: f32[8,512], index: 5, kind: output, shape index: {}]
  %s6 = sld [smem:[#allocation0]]
  $region77: #{supernet_layer.1} parent=0
    _
  %s8 = ssub.s32 1, %s6
  %s9 = scalar_select 0, %s8, %s6
  loop: start=0, step=1, limit=8
  $region2: #{supernet_layer.1} parent=0 // loop_pre_header
    _
  $region3: #{supernet_layer.1} parent=0 // loop_header
    %s11 = sphi 0, %s15
    %p12 = scmp.ge.s32.totalorder %s11, 8
    %s18 = sphi 0, %s37
    %s19 = sphi 0, %s33
    %s20 = sphi 0, %s29
    %s21 = sphi 0, %s18
    %s22 = sphi 0, %s19
    %s23 = sphi 0, %s20
    %s24 = sphi 0, %s21
    %s25 = sphi 0, %s22
    %s26 = sphi 0, %s23
    %s40 = sphi 0, %s42
    %s43 = sphi 0, %s40
    %s44 = sphi 0, %s43
    %s60 = sphi 0, %s44
    %s70 = sphi 0, %s72
    %s73 = sphi 0, %s70
    %s74 = sphi 0, %s73
    %s90 = sphi 0, %s74
    %s96 = sphi 0, %s98
    %s99 = sphi 0, %s96
    %s100 = sphi 0, %s99
    %s116 = sphi 0, %s100
    %s122 = sphi 0, %s124
    %s125 = sphi 0, %s122
    %s126 = sphi 0, %s125
    %s142 = sphi 0, %s126
    %s148 = sphi 0, %s150
    %s151 = sphi 0, %s148
    %s152 = sphi 0, %s151
    %s168 = sphi 0, %s152
    %s184 = sphi 0, %s186
    %s187 = sphi 0, %s184
    %s188 = sphi 0, %s187
    %s204 = sphi 0, %s188
  $region4: #{supernet_layer.1} parent=0 // loop_header_branch
    %14 = sbr.rel (%p12) target = $region8
  $region5: #{supernet_layer.1} parent=0 // loop_body
    %s16 = ssub.s32 %s11, 1
    %s17 = ssub.s32 %s11, 2
    %s27 = sadd.s32 1, %s20
    %p28 = scmp.ge.s32.totalorder %s27, 1
    %s29 = scalar_select %p28, 0, %s27
    %s30 = sadd.s32 1, %s19
    %s31 = scalar_select %p28, %s30, %s19
    %p32 = scmp.ge.s32.totalorder %s31, 2
    %s33 = scalar_select %p32, 0, %s31
    %s34 = sadd.s32 1, %s18
    %s35 = scalar_select %p32, %s34, %s18
    %p36 = scmp.ge.s32.totalorder %s35, 3
    %s37 = scalar_select %p36, 0, %s35
    %s38 = ssub.s32 %s18, %s37
    %p39 = scmp.eq.s32.totalorder %s38, 0
    %s41 = sadd.s32 %s40, 1
    %s42 = scalar_select %p39, %s40, %s41
    %p45 = pneg %p39
    %p46 = scmp.eq.s32.totalorder %s11, 5
    %p47 = por %p45, %p46
    %p48 = scmp.ne.s32.totalorder %s40, %s43
    %p49 = scmp.eq.s32.totalorder %s11, 0
    %p50 = por %p48, %p49
    %p51 = scmp.ne.s32.totalorder %s40, %s43
    %p52 = scmp.eq.s32.totalorder %s16, 5
    %p53 = por %p51, %p52
    %p54 = scmp.ne.s32.totalorder %s43, %s44
    %p55 = scmp.eq.s32.totalorder %s16, 0
    %p56 = por %p54, %p55
    %p57 = scmp.ne.s32.totalorder %s43, %s44
    %p58 = scmp.eq.s32.totalorder %s17, 5
    %p59 = por %p57, %p58
    %p61 = scmp.ne.s32.totalorder %s44, %s60
    %p62 = scmp.eq.s32.totalorder %s17, 0
    %p63 = por %p61, %p62
    %s64 = ssub.s32 1, %s19
    %s65 = smul.u32 %s20, %s64
    %s66 = ssub.s32 1, %s33
    %s67 = smul.u32 %s29, %s66
    %s68 = ssub.s32 %s65, %s67
    %p69 = scmp.eq.s32.totalorder %s68, 0
    %s71 = sadd.s32 %s70, 1
    %s72 = scalar_select %p69, %s70, %s71
    %p75 = pneg %p69
    %p76 = scmp.eq.s32.totalorder %s11, 5
    %p77 = por %p75, %p76
    %p78 = scmp.ne.s32.totalorder %s70, %s73
    %p79 = scmp.eq.s32.totalorder %s11, 0
    %p80 = por %p78, %p79
    %p81 = scmp.ne.s32.totalorder %s70, %s73
    %p82 = scmp.eq.s32.totalorder %s16, 5
    %p83 = por %p81, %p82
    %p84 = scmp.ne.s32.totalorder %s73, %s74
    %p85 = scmp.eq.s32.totalorder %s16, 0
    %p86 = por %p84, %p85
    %p87 = scmp.ne.s32.totalorder %s73, %s74
    %p88 = scmp.eq.s32.totalorder %s17, 5
    %p89 = por %p87, %p88
    %p91 = scmp.ne.s32.totalorder %s74, %s90
    %p92 = scmp.eq.s32.totalorder %s17, 0
    %p93 = por %p91, %p92
    %s94 = ssub.s32 %s18, %s37
    %p95 = scmp.eq.s32.totalorder %s94, 0
    %s97 = sadd.s32 %s96, 1
    %s98 = scalar_select %p95, %s96, %s97
    %p101 = pneg %p95
    %p102 = scmp.eq.s32.totalorder %s11, 5
    %p103 = por %p101, %p102
    %p104 = scmp.ne.s32.totalorder %s96, %s99
    %p105 = scmp.eq.s32.totalorder %s11, 0
    %p106 = por %p104, %p105
    %p107 = scmp.ne.s32.totalorder %s96, %s99
    %p108 = scmp.eq.s32.totalorder %s16, 5
    %p109 = por %p107, %p108
    %p110 = scmp.ne.s32.totalorder %s99, %s100
    %p111 = scmp.eq.s32.totalorder %s16, 0
    %p112 = por %p110, %p111
    %p113 = scmp.ne.s32.totalorder %s99, %s100
    %p114 = scmp.eq.s32.totalorder %s17, 5
    %p115 = por %p113, %p114
    %p117 = scmp.ne.s32.totalorder %s100, %s116
    %p118 = scmp.eq.s32.totalorder %s17, 0
    %p119 = por %p117, %p118
    %s120 = ssub.s32 %s18, %s37
    %p121 = scmp.eq.s32.totalorder %s120, 0
    %s123 = sadd.s32 %s122, 1
    %s124 = scalar_select %p121, %s122, %s123
    %p127 = pneg %p121
    %p128 = scmp.eq.s32.totalorder %s11, 5
    %p129 = por %p127, %p128
    %p130 = scmp.ne.s32.totalorder %s122, %s125
    %p131 = scmp.eq.s32.totalorder %s11, 0
    %p132 = por %p130, %p131
    %p133 = scmp.ne.s32.totalorder %s122, %s125
    %p134 = scmp.eq.s32.totalorder %s16, 5
    %p135 = por %p133, %p134
    %p136 = scmp.ne.s32.totalorder %s125, %s126
    %p137 = scmp.eq.s32.totalorder %s16, 0
    %p138 = por %p136, %p137
    %p139 = scmp.ne.s32.totalorder %s125, %s126
    %p140 = scmp.eq.s32.totalorder %s17, 5
    %p141 = por %p139, %p140
    %p143 = scmp.ne.s32.totalorder %s126, %s142
    %p144 = scmp.eq.s32.totalorder %s17, 0
    %p145 = por %p143, %p144
    %s146 = ssub.s32 %s18, %s37
    %p147 = scmp.eq.s32.totalorder %s146, 0
    %s149 = sadd.s32 %s148, 1
    %s150 = scalar_select %p147, %s148, %s149
    %p153 = pneg %p147
    %p154 = scmp.eq.s32.totalorder %s11, 5
    %p155 = por %p153, %p154
    %p156 = scmp.ne.s32.totalorder %s148, %s151
    %p157 = scmp.eq.s32.totalorder %s11, 0
    %p158 = por %p156, %p157
    %p159 = scmp.ne.s32.totalorder %s148, %s151
    %p160 = scmp.eq.s32.totalorder %s16, 5
    %p161 = por %p159, %p160
    %p162 = scmp.ne.s32.totalorder %s151, %s152
    %p163 = scmp.eq.s32.totalorder %s16, 0
    %p164 = por %p162, %p163
    %p165 = scmp.ne.s32.totalorder %s151, %s152
    %p166 = scmp.eq.s32.totalorder %s17, 5
    %p167 = por %p165, %p166
    %p169 = scmp.ne.s32.totalorder %s152, %s168
    %p170 = scmp.eq.s32.totalorder %s17, 0
    %p171 = por %p169, %p170
    %p172 = scmp.eq.s32.totalorder %s18, 2
    %p173 = scmp.eq.s32.totalorder %s19, 1
    %p174 = pnand %p172, %p173
    %p175 = pneg %p174
    %s176 = scalar_select %p175, %s20, 0
    %p177 = scmp.eq.s32.totalorder %s37, 2
    %p178 = scmp.eq.s32.totalorder %s33, 1
    %p179 = pnand %p177, %p178
    %p180 = pneg %p179
    %s181 = scalar_select %p180, %s29, 0
    %s182 = ssub.s32 %s176, %s181
    %p183 = scmp.eq.s32.totalorder %s182, 0
    %s185 = sadd.s32 %s184, 1
    %s186 = scalar_select %p183, %s184, %s185
    %p189 = pneg %p183
    %p190 = scmp.eq.s32.totalorder %s11, 5
    %p191 = por %p189, %p190
    %p192 = scmp.ne.s32.totalorder %s184, %s187
    %p193 = scmp.eq.s32.totalorder %s11, 0
    %p194 = por %p192, %p193
    %p195 = scmp.ne.s32.totalorder %s184, %s187
    %p196 = scmp.eq.s32.totalorder %s16, 5
    %p197 = por %p195, %p196
    %p198 = scmp.ne.s32.totalorder %s187, %s188
    %p199 = scmp.eq.s32.totalorder %s16, 0
    %p200 = por %p198, %p199
    %p201 = scmp.ne.s32.totalorder %s187, %s188
    %p202 = scmp.eq.s32.totalorder %s17, 5
    %p203 = por %p201, %p202
    %p205 = scmp.ne.s32.totalorder %s188, %s204
    %p206 = scmp.eq.s32.totalorder %s17, 0
    %p207 = por %p205, %p206
    %p208 = scmp.le.s32.totalorder 1, %s11
    %p209 = scmp.lt.s32.totalorder %s11, 7
    %p210 = pnand %p208, %p209
    %p211 = pneg %p210
    // Predicated region
    $region9: #{supernet_layer.1} parent=5 // pred_check
      _
    $region10: #{supernet_layer.1} parent=5 // pred_check_branch
      %213 = sbr.rel (%p210) target = $region12
    $region11: #{supernet_layer.1} parent=5 // pred_region
      %s214 = ssub.s32 %s11, 1
    $region12: #{supernet_layer.1} parent=5 // pred_fallthru
      _
    %p215 = scmp.lt.s32.totalorder %s11, 6
    // Predicated region
    $region13: #{supernet_layer.1} parent=5 // pred_check
      %p216 = pneg %p215
    $region14: #{supernet_layer.1} parent=5 // pred_check_branch
      %218 = sbr.rel (%p216) target = $region16
    $region15: #{supernet_layer.1} parent=5 // pred_region
      // Predicated region
      $region17: #{supernet_layer.1} parent=15 // pred_check
        %p219 = pneg %p50
      $region18: #{supernet_layer.1} parent=15 // pred_check_branch
        %221 = sbr.rel (%p219) target = $region20
      $region19: #{supernet_layer.1} parent=15 // pred_region
        %p222 = scmp.lt.s32.totalorder %s18, 2
        %s223 = scalar_select %p222, %s18, 2
        %s224 = smul.addr %s223, 8
        %s225 = scalar_lea.vmem %s0, %s224
      $region20: #{supernet_layer.1} parent=15 // pred_fallthru
        _
      // Predicated region
      $region21: #{supernet_layer.1} parent=15 // pred_check
        %p226 = pneg %p80
      $region22: #{supernet_layer.1} parent=15 // pred_check_branch
        %228 = sbr.rel (%p226) target = $region24
      $region23: #{supernet_layer.1} parent=15 // pred_region
        %s229 = ssub.s32 1, %s19
        %s230 = smul.u32 %s20, %s229
        %s231 = smul.u32 4, %s230
        %p232 = scmp.lt.s32.totalorder %s231, 3
        %s233 = scalar_select %p232, %s231, 3
        %s234 = smul.addr %s233, 8
        %s235 = scalar_lea.vmem %s1, %s234
        %s236 = ssub.s32 1, %s19
        %s237 = smul.u32 %s20, %s236
        %s238 = smul.u32 4, %s237
      $region24: #{supernet_layer.1} parent=15 // pred_fallthru
        _
      // Predicated region
      $region25: #{supernet_layer.1} parent=15 // pred_check
        %p239 = pneg %p106
      $region26: #{supernet_layer.1} parent=15 // pred_check_branch
        %241 = sbr.rel (%p239) target = $region28
      $region27: #{supernet_layer.1} parent=15 // pred_region
        %p242 = scmp.lt.s32.totalorder %s18, 2
        %s243 = scalar_select %p242, %s18, 2
        %s244 = smul.addr %s243, 8
        %s245 = scalar_lea.vmem %s2, %s244
      $region28: #{supernet_layer.1} parent=15 // pred_fallthru
        _
      // Predicated region
      $region29: #{supernet_layer.1} parent=15 // pred_check
        %p246 = pneg %p132
      $region30: #{supernet_layer.1} parent=15 // pred_check_branch
        %248 = sbr.rel (%p246) target = $region32
      $region31: #{supernet_layer.1} parent=15 // pred_region
        %p249 = scmp.lt.s32.totalorder %s18, 2
        %s250 = scalar_select %p249, %s18, 2
        %s251 = smul.addr %s250, 8
        %s252 = scalar_lea.vmem %s3, %s251
      $region32: #{supernet_layer.1} parent=15 // pred_fallthru
        _
      // Predicated region
      $region33: #{supernet_layer.1} parent=15 // pred_check
        %p253 = pneg %p158
      $region34: #{supernet_layer.1} parent=15 // pred_check_branch
        %255 = sbr.rel (%p253) target = $region36
      $region35: #{supernet_layer.1} parent=15 // pred_region
        %p256 = scmp.lt.s32.totalorder %s18, 2
        %s257 = scalar_select %p256, %s18, 2
        %s258 = scalar_lea.vmem %s4, %s257
      $region36: #{supernet_layer.1} parent=15 // pred_fallthru
        _
    $region16: #{supernet_layer.1} parent=5 // pred_fallthru
      _
    %p259 = scmp.le.s32.totalorder 1, %s11
    %p260 = scmp.lt.s32.totalorder %s11, 7
    %p261 = pnand %p259, %p260
    %p262 = pneg %p261
    // Predicated region
    $region37: #{supernet_layer.1} parent=5 // pred_check
      _
    $region38: #{supernet_layer.1} parent=5 // pred_check_branch
      %264 = sbr.rel (%p261) target = $region40
    $region39: #{supernet_layer.1} parent=5 // pred_region
      %s265 = ssub.s32 %s11, 1
      %p266 = scmp.lt.s32.totalorder %s21, 2
      %s267 = scalar_select %p266, %s21, 2
      %s268 = smul.addr %s267, 8
      %s269 = scalar_lea.vmem %s0, %s268
      %p270 = pneg %p56
      %p271 = pneg %p53
      %s272 = ssub.s32 1, %s22
      %s273 = smul.u32 %s23, %s272
      %s274 = smul.u32 4, %s273
      %p275 = scmp.lt.s32.totalorder %s274, 3
      %s276 = scalar_select %p275, %s274, 3
      %s277 = smul.addr %s276, 8
      %s278 = scalar_lea.vmem %s1, %s277
      %p279 = pneg %p86
      %p280 = pneg %p83
      %p281 = scmp.lt.s32.totalorder %s21, 2
      %s282 = scalar_select %p281, %s21, 2
      %s283 = smul.addr %s282, 8
      %s284 = scalar_lea.vmem %s2, %s283
      %p285 = pneg %p112
      %p286 = pneg %p109
      %p287 = scmp.lt.s32.totalorder %s21, 2
      %s288 = scalar_select %p287, %s21, 2
      %s289 = smul.addr %s288, 8
      %s290 = scalar_lea.vmem %s3, %s289
      %p291 = pneg %p138
      %p292 = pneg %p135
      %p293 = scmp.lt.s32.totalorder %s21, 2
      %s294 = scalar_select %p293, %s21, 2
      %s295 = scalar_lea.vmem %s4, %s294
      %p296 = pneg %p164
      %p297 = pneg %p161
      %p298 = pneg %p200
      %p299 = pneg %p197
      %p300 = scmp.eq.s32.totalorder %s21, 2
      %p301 = scmp.eq.s32.totalorder %s22, 1
      %p302 = pnand %p300, %p301
      %p303 = pneg %p302
      %s304 = scalar_select %p303, %s23, 0
      %s305 = smul.u32 4, %s304
      %p306 = scmp.lt.s32.totalorder %s305, 3
      %s307 = scalar_select %p306, %s305, 3
      %s308 = smul.addr %s307, 8
      %s309 = scalar_lea.vmem %s5, %s308
      %p310 = scmp.lt.s32.totalorder %s21, 2
      %s311 = scalar_select %p310, %s21, 2
      %s312 = smul.addr %s311, 8
      %s313 = scalar_lea.vmem %s0, %s312
      %s314 = ssub.s32 1, %s22
      %s315 = smul.u32 %s23, %s314
      %s316 = smul.u32 4, %s315
      %p317 = scmp.lt.s32.totalorder %s316, 3
      %s318 = scalar_select %p317, %s316, 3
      %s319 = smul.addr %s318, 8
      %s320 = scalar_lea.vmem %s1, %s319
      %s321 = ssub.s32 1, %s22
      %s322 = smul.u32 %s23, %s321
      %s323 = smul.u32 4, %s322
      %p324 = scmp.lt.s32.totalorder %s21, 2
      %s325 = scalar_select %p324, %s21, 2
      %s326 = smul.addr %s325, 8
      %s327 = scalar_lea.vmem %s2, %s326
      %p328 = scmp.lt.s32.totalorder %s21, 2
      %s329 = scalar_select %p328, %s21, 2
      %s330 = smul.addr %s329, 8
      %s331 = scalar_lea.vmem %s3, %s330
      %p332 = scmp.lt.s32.totalorder %s21, 2
      %s333 = scalar_select %p332, %s21, 2
      %s334 = scalar_lea.vmem %s4, %s333
      %p335 = scmp.eq.s32.totalorder %s21, 2
      %p336 = scmp.eq.s32.totalorder %s22, 1
      %p337 = pnand %p335, %p336
      %p338 = pneg %p337
      %s339 = scalar_select %p338, %s23, 0
      %s340 = smul.u32 4, %s339
      %p341 = scmp.lt.s32.totalorder %s340, 3
      %s342 = scalar_select %p341, %s340, 3
      %s343 = smul.addr %s342, 8
      %s344 = scalar_lea.vmem %s5, %s343
      %p345 = scmp.eq.s32.totalorder %s21, 2
      %p346 = scmp.eq.s32.totalorder %s22, 1
      %p347 = pnand %p345, %p346
      %p348 = pneg %p347
      %s349 = scalar_select %p348, %s23, 0
      %s350 = smul.u32 4, %s349
      %s351 = smul.u32 %s23, 512
      %p352 = scmp.eq.s32.totalorder %s21, 0
      %p353 = scmp.eq.s32.totalorder %s22, 0
      %p354 = pnand %p352, %p353
      %p355 = pneg %p354
      %p356 = scmp.eq.s32.totalorder %s23, 0
      %p357 = pnand %p355, %p356
      %p358 = pneg %p357
      // Predicated region
      $region41: #{supernet_layer.1} parent=39 // pred_check
        _
      $region42: #{supernet_layer.1} parent=39 // pred_check_branch
        %360 = sbr.rel (%p357) target = $region44
      $region43: #{supernet_layer.1} parent=39 // pred_region
        %361 = vst [vmem:[#allocation3] sm:$0xff] 0.0
        %362 = vst [vmem:[#allocation3 + $0x8] sm:$0xff] 0.0
        %363 = vst [vmem:[#allocation3 + $0x10] sm:$0xff] 0.0
        %364 = vst [vmem:[#allocation3 + $0x18] sm:$0xff] 0.0
      $region44: #{supernet_layer.1} parent=39 // pred_fallthru
        _
      %p365 = pnand %p353, %p356
      %p366 = pneg %p365
      // Predicated region
      $region45: #{supernet_layer.1} parent=39 // pred_check
        _
      $region46: #{supernet_layer.1} parent=39 // pred_check_branch
        %368 = sbr.rel (%p365) target = $region48
      $region47: #{supernet_layer.1} parent=39 // pred_region
        %vm369 = vcmask 7168
        %370 = vst.msk [vmem:[#allocation4] sm:$0xff] %vm369, 0.0
        %371 = vst.msk [vmem:[#allocation5] sm:$0xff] %vm369, 0.0
      $region48: #{supernet_layer.1} parent=39 // pred_fallthru
        _
      // Predicated region
      $region49: #{supernet_layer.1} parent=39 // pred_check
        %p372 = pneg %p353
      $region50: #{supernet_layer.1} parent=39 // pred_check_branch
        %374 = sbr.rel (%p372) target = $region52
      $region51: #{supernet_layer.1} parent=39 // pred_region
        %v375 = vld [vmem:[%s313] sm:$0xff]
        %v376 = vld [vmem:[%s320] sm:$0xff]
        %v377 = vld [vmem:[%s320 + $0x8] sm:$0xff]
        %v378 = vld [vmem:[%s320 + $0x10] sm:$0xff]
        %v379 = vld [vmem:[%s320 + $0x18] sm:$0xff]
        %v380 = vld [vmem:[%s320 + $0x20] sm:$0xff]
        %v381 = vld [vmem:[%s320 + $0x28] sm:$0xff]
        %v382 = vld [vmem:[%s320 + $0x30] sm:$0xff]
        %v383 = vld [vmem:[%s320 + $0x38] sm:$0xff]
        %v384 = vld [vmem:[%s320 + $0x40] sm:$0xff]
        %v385 = vld [vmem:[%s320 + $0x48] sm:$0xff]
        %v386 = vld [vmem:[%s320 + $0x50] sm:$0xff]
        %v387 = vld [vmem:[%s320 + $0x58] sm:$0xff]
        %v388 = vld [vmem:[%s320 + $0x60] sm:$0xff]
        %v389 = vld [vmem:[%s320 + $0x68] sm:$0xff]
        %v390 = vld [vmem:[%s320 + $0x70] sm:$0xff]
        %v391 = vld [vmem:[%s320 + $0x78] sm:$0xff]
        %v392 = vld [vmem:[%s320 + $0x80] sm:$0xf]
        %v393 = vld [vmem:[%s320 + $0x88] sm:$0xf]
        %v394 = vld [vmem:[%s320 + $0x90] sm:$0xf]
        %v395 = vld [vmem:[%s320 + $0x98] sm:$0xf]
        %vm396 = vcmask 293888
        %v398 = vsel %vm396, %v375, 0
        %vm400 = vcmask 1043456
        %v402 = vsel %vm400, %v392, 0
        %v405 = vsel %vm400, %v393, 0
        %v408 = vsel %vm400, %v394, 0
        %v411 = vsel %vm400, %v395, 0
        %413 = vmatprep.subr.mxu0 0.0
        %414 = vmatpush1.msra.mxu0 0.0
        %415 = vmatprep.subr.mxu0 0.0
        %416 = vmatpush1.msra.mxu0 0.0
        %417 = vmatprep.subr.mxu0 0.0
        %418 = vmatpush1.msra.mxu0 0.0
        %419 = vmatprep.subr.mxu0 0.0
        %420 = vmatpush1.msra.mxu0 0.0
        %421 = vmatprep.subr.mxu0 0.0
        %422 = vmatpush1.msra.mxu0 0.0
        %423 = vmatprep.subr.mxu0 0.0
        %424 = vmatpush1.msra.mxu0 0.0
        %425 = vmatprep.subr.mxu0 0.0
        %426 = vmatpush1.msra.mxu0 0.0
        %427 = vmatprep.subr.mxu0 0.0
        %428 = vmatpush1.msra.mxu0 0.0
        %429 = vmatprep.subr.mxu0 0.0
        %430 = vmatpush1.msra.mxu0 0.0
        %431 = vmatprep.subr.mxu0 0.0
        %432 = vmatpush1.msra.mxu0 0.0
        %433 = vmatprep.subr.mxu0 0.0
        %434 = vmatpush1.msra.mxu0 0.0
        %435 = vmatprep.subr.mxu0 %v405
        %436 = vmatpush1.msra.mxu0 %v402
        %437 = vmatprep.subr.mxu0 %v389
        %438 = vmatpush1.msra.mxu0 %v388
        %439 = vmatprep.subr.mxu0 %v385
        %440 = vmatpush1.msra.mxu0 %v384
        %441 = vmatprep.subr.mxu0 %v381
        %442 = vmatpush1.msra.mxu0 %v380
        %443 = vmatprep.subr.mxu0 %v377
        %444 = vmatpush1.msra.mxu0 %v376
        %445 = vmatprep.subr.mxu0 0.0
        %446 = vmatpush2.msra.mxu0 0.0
        %447 = vmatprep.subr.mxu0 0.0
        %448 = vmatpush2.msra.mxu0 0.0
        %449 = vmatprep.subr.mxu0 0.0
        %450 = vmatpush2.msra.mxu0 0.0
        %451 = vmatprep.subr.mxu0 0.0
        %452 = vmatpush2.msra.mxu0 0.0
        %453 = vmatprep.subr.mxu0 0.0
        %454 = vmatpush2.msra.mxu0 0.0
        %455 = vmatprep.subr.mxu0 0.0
        %456 = vmatpush2.msra.mxu0 0.0
        %457 = vmatprep.subr.mxu0 0.0
        %458 = vmatpush2.msra.mxu0 0.0
        %459 = vmatprep.subr.mxu0 0.0
        %460 = vmatpush2.msra.mxu0 0.0
        %461 = vmatprep.subr.mxu0 0.0
        %462 = vmatpush2.msra.mxu0 0.0
        %463 = vmatprep.subr.mxu0 0.0
        %464 = vmatpush2.msra.mxu0 0.0
        %465 = vmatprep.subr.mxu0 0.0
        %466 = vmatpush2.msra.mxu0 0.0
        %467 = vmatprep.subr.mxu0 0.0
        %468 = vmatpush2.msra.mxu0 0.0
        %469 = vmatprep.subr.mxu0 0.0
        %470 = vmatpush2.msra.mxu0 0.0
        %471 = vmatprep.subr.mxu0 0.0
        %472 = vmatpush2.msra.mxu0 0.0
        %473 = vmatprep.subr.mxu0 0.0
        %474 = vmatpush2.msra.mxu0 0.0
        %475 = vmatprep.subr.mxu0 0.0
        %476 = vmatpush2.msra.mxu0 0.0
        %477 = vmatprep.mubr.f32.mxu0 0.0
        %478 = vmatmul.mubr.f32.gmra.mxu0 %v398
        %v479 = vpop.f32.mrf.mxu0
        %v480 = vadd.f32 0.0, %v479
        %v481 = vpop.f32.mrf.mxu0
        %v482 = vadd.f32 0.0, %v481
        %483 = vdwg.mxu0
        %484 = vmatprep.subr.mxu0 0.0
        %485 = vmatpush1.msra.mxu0 0.0
        %486 = vmatprep.subr.mxu0 0.0
        %487 = vmatpush1.msra.mxu0 0.0
        %488 = vmatprep.subr.mxu0 0.0
        %489 = vmatpush1.msra.mxu0 0.0
        %490 = vmatprep.subr.mxu0 0.0
        %491 = vmatpush1.msra.mxu0 0.0
        %492 = vmatprep.subr.mxu0 0.0
        %493 = vmatpush1.msra.mxu0 0.0
        %494 = vmatprep.subr.mxu0 0.0
        %495 = vmatpush1.msra.mxu0 0.0
        %496 = vmatprep.subr.mxu0 0.0
        %497 = vmatpush1.msra.mxu0 0.0
        %498 = vmatprep.subr.mxu0 0.0
        %499 = vmatpush1.msra.mxu0 0.0
        %500 = vmatprep.subr.mxu0 0.0
        %501 = vmatpush1.msra.mxu0 0.0
        %502 = vmatprep.subr.mxu0 0.0
        %503 = vmatpush1.msra.mxu0 0.0
        %504 = vmatprep.subr.mxu0 0.0
        %505 = vmatpush1.msra.mxu0 0.0
        %506 = vmatprep.subr.mxu0 %v411
        %507 = vmatpush1.msra.mxu0 %v408
        %508 = vmatprep.subr.mxu0 %v391
        %509 = vmatpush1.msra.mxu0 %v390
        %510 = vmatprep.subr.mxu0 %v387
        %511 = vmatpush1.msra.mxu0 %v386
        %512 = vmatprep.subr.mxu0 %v383
        %513 = vmatpush1.msra.mxu0 %v382
        %514 = vmatprep.subr.mxu0 %v379
        %515 = vmatpush1.msra.mxu0 %v378
        %516 = vmatprep.subr.mxu0 0.0
        %517 = vmatpush2.msra.mxu0 0.0
        %518 = vmatprep.subr.mxu0 0.0
        %519 = vmatpush2.msra.mxu0 0.0
        %520 = vmatprep.subr.mxu0 0.0
        %521 = vmatpush2.msra.mxu0 0.0
        %522 = vmatprep.subr.mxu0 0.0
        %523 = vmatpush2.msra.mxu0 0.0
        %524 = vmatprep.subr.mxu0 0.0
        %525 = vmatpush2.msra.mxu0 0.0
        %526 = vmatprep.subr.mxu0 0.0
        %527 = vmatpush2.msra.mxu0 0.0
        %528 = vmatprep.subr.mxu0 0.0
        %529 = vmatpush2.msra.mxu0 0.0
        %530 = vmatprep.subr.mxu0 0.0
        %531 = vmatpush2.msra.mxu0 0.0
        %532 = vmatprep.subr.mxu0 0.0
        %533 = vmatpush2.msra.mxu0 0.0
        %534 = vmatprep.subr.mxu0 0.0
        %535 = vmatpush2.msra.mxu0 0.0
        %536 = vmatprep.subr.mxu0 0.0
        %537 = vmatpush2.msra.mxu0 0.0
        %538 = vmatprep.subr.mxu0 0.0
        %539 = vmatpush2.msra.mxu0 0.0
        %540 = vmatprep.subr.mxu0 0.0
        %541 = vmatpush2.msra.mxu0 0.0
        %542 = vmatprep.subr.mxu0 0.0
        %543 = vmatpush2.msra.mxu0 0.0
        %544 = vmatprep.subr.mxu0 0.0
        %545 = vmatpush2.msra.mxu0 0.0
        %546 = vmatprep.subr.mxu0 0.0
        %547 = vmatpush2.msra.mxu0 0.0
        %548 = vmatprep.mubr.f32.mxu0 0.0
        %549 = vmatmul.mubr.f32.gmra.mxu0 %v398
        %v550 = vpop.f32.mrf.mxu0
        %v551 = vadd.f32 0.0, %v550
        %v552 = vpop.f32.mrf.mxu0
        %v553 = vadd.f32 0.0, %v552
        %554 = vdwg.mxu0
        %s555 = sshra.s32 %s351, 7
        %s556 = sand.u32 %s351, 127
        %s557 = smul.addr %s555, 8
        %s558 = scalar_lea.vmem [#allocation2], %s557
        %559 = vst [vmem:[%s558] sm:$0xff] %v480
        %560 = vst [vmem:[%s558 + $0x8] sm:$0xff] %v482
        %561 = vst [vmem:[%s558 + $0x10] sm:$0xff] %v551
        %562 = vst [vmem:[%s558 + $0x18] sm:$0xff] %v553
        %v563 = vld [vmem:[#allocation4] sm:$0xff]
        %v564 = vadd.f32 %v480, %v482
        %v565 = vadd.f32 %v564, %v551
        %v566 = vadd.f32 %v565, %v553
        %567 = vadd.xlane.f32.xlu0 %v566
        %v568 = vpop.xlane.xlu0 %567
        %v569 = vadd.f32 %v563, %v568
        %vm570 = vcmask 7168
        %571 = vst.msk [vmem:[#allocation4] sm:$0xff] %vm570, %v569
        %v572 = vld [vmem:[#allocation5] sm:$0xff]
        %v573 = vmul.f32 %v480, %v480
        %v574 = vmul.f32 %v482, %v482
        %v575 = vmul.f32 %v551, %v551
        %v576 = vmul.f32 %v553, %v553
        %v577 = vadd.f32 %v573, %v574
        %v578 = vadd.f32 %v577, %v575
        %v579 = vadd.f32 %v578, %v576
        %580 = vadd.xlane.f32.xlu0 %v579
        %v581 = vpop.xlane.xlu0 %580
        %v582 = vadd.f32 %v572, %v581
        %583 = vst.msk [vmem:[#allocation5] sm:$0xff] %vm570, %v582
      $region52: #{supernet_layer.1} parent=39 // pred_fallthru
        _
      %p584 = scmp.eq.s32.totalorder %s22, 1
      %p585 = pnand %p584, %p356
      %p586 = pneg %p585
      // Predicated region
      $region53: #{supernet_layer.1} parent=39 // pred_check
        _
      $region54: #{supernet_layer.1} parent=39 // pred_check_branch
        %588 = sbr.rel (%p585) target = $region56
      $region55: #{supernet_layer.1} parent=39 // pred_region
        %v589 = vld [vmem:[#allocation4] sm:$0xff]
        %v590 = vmul.f32 %v589, 0.001953125
        %v591 = vld [vmem:[#allocation5] sm:$0xff]
        %v592 = vmul.f32 %v591, 0.001953125
        %v593 = vmul.f32 %v590, %v590
        %v594 = vsub.f32 %v592, %v593
        %v595 = vmax.f32 %v594, 0.0
        %v596 = vadd.f32 %v595, 1e-05
        %v597 = vrsqrt.pop %v596
        %v598 = vld [vmem:[%s327] sm:$0xff]
        %v599 = vmul.f32 %v598, %v597
        %vm600 = vcmask 7168
        %601 = vst.msk [vmem:[#allocation6] sm:$0xff] %vm600, %v599
        %v602 = vld [vmem:[%s331] sm:$0xff]
        %v603 = vmul.f32 %v590, %v599
        %v604 = vsub.f32 %v602, %v603
        %605 = vst.msk [vmem:[#allocation7] sm:$0xff] %vm600, %v604
      $region56: #{supernet_layer.1} parent=39 // pred_fallthru
        _
      // Predicated region
      $region57: #{supernet_layer.1} parent=39 // pred_check
        %p606 = pneg %p584
      $region58: #{supernet_layer.1} parent=39 // pred_check_branch
        %608 = sbr.rel (%p606) target = $region60
      $region59: #{supernet_layer.1} parent=39 // pred_region
        %s609 = sshra.s32 %s351, 7
        %s610 = sand.u32 %s351, 127
        %s611 = smul.addr %s609, 8
        %s612 = scalar_lea.vmem [#allocation2], %s611
        %v613 = vld [vmem:[%s612] sm:$0xff]
        %v614 = vld [vmem:[%s612 + $0x8] sm:$0xff]
        %v615 = vld [vmem:[%s612 + $0x10] sm:$0xff]
        %v616 = vld [vmem:[%s612 + $0x18] sm:$0xff]
        %v617 = vld [vmem:[#allocation6] sm:$0xff]
        %619 = vset.pattern.permute.xlu0 0
        %620 = vperm.xlu0 %619, %v617
        %v621 = vpop.permute.xlu0 %620
        %v623 = vmul.f32 %v613, %v621
        %v624 = vmul.f32 %v614, %v621
        %v625 = vmul.f32 %v615, %v621
        %v626 = vmul.f32 %v616, %v621
        %v627 = vld [vmem:[#allocation7] sm:$0xff]
        %629 = vset.pattern.permute.xlu0 0
        %630 = vperm.xlu0 %629, %v627
        %v631 = vpop.permute.xlu0 %630
        %v633 = vadd.f32 %v623, %v631
        %v634 = vadd.f32 %v624, %v631
        %v635 = vadd.f32 %v625, %v631
        %v636 = vadd.f32 %v626, %v631
        %v637 = vmax.f32 %v633, 0.0
        %v638 = vmax.f32 %v634, 0.0
        %v639 = vmax.f32 %v635, 0.0
        %v640 = vmax.f32 %v636, 0.0
        %s641 = smul.addr %s609, 8
        %s642 = scalar_lea.vmem [#allocation3], %s641
        %v643 = vld [vmem:[%s642] sm:$0xff]
        %v644 = vld [vmem:[%s642 + $0x8] sm:$0xff]
        %v645 = vld [vmem:[%s642 + $0x10] sm:$0xff]
        %v646 = vld [vmem:[%s642 + $0x18] sm:$0xff]
        %v647 = vld [vmem:[%s334] sm:$0x1]
        %v649 = vlaneseq
        %v650 = vshrl.u32 %v649, 7
        %v651 = vsub.s32 0, %v650
        %v652 = vrot.slane %v647, %v651
        %653 = vset.pattern.permute.xlu0 0
        %654 = vperm.xlu0 %653, %v652
        %v655 = vpop.permute.xlu0 %654
        %v657 = vmul.f32 %v655, %v637
        %v658 = vmul.f32 %v655, %v638
        %v659 = vmul.f32 %v655, %v639
        %v660 = vmul.f32 %v655, %v640
        %v661 = vadd.f32 %v643, %v657
        %v662 = vadd.f32 %v644, %v658
        %v663 = vadd.f32 %v645, %v659
        %v664 = vadd.f32 %v646, %v660
        %665 = vst [vmem:[%s642] sm:$0xff] %v661
        %666 = vst [vmem:[%s642 + $0x8] sm:$0xff] %v662
        %667 = vst [vmem:[%s642 + $0x10] sm:$0xff] %v663
        %668 = vst [vmem:[%s642 + $0x18] sm:$0xff] %v664
      $region60: #{supernet_layer.1} parent=39 // pred_fallthru
        _
      %p669 = scmp.eq.s32.totalorder %s21, 2
      %p670 = pnand %p669, %p584
      %p671 = pneg %p670
      // Predicated region
      $region61: #{supernet_layer.1} parent=39 // pred_check
        _
      $region62: #{supernet_layer.1} parent=39 // pred_check_branch
        %673 = sbr.rel (%p670) target = $region64
      $region63: #{supernet_layer.1} parent=39 // pred_region
        %s674 = sshra.s32 %s351, 7
        %s675 = sand.u32 %s351, 127
        %s676 = smul.addr %s674, 8
        %s677 = scalar_lea.vmem [#allocation3], %s676
        %v678 = vld [vmem:[%s677] sm:$0xff]
        %v679 = vld [vmem:[%s677 + $0x8] sm:$0xff]
        %v680 = vld [vmem:[%s677 + $0x10] sm:$0xff]
        %v681 = vld [vmem:[%s677 + $0x18] sm:$0xff]
        %682 = vst [vmem:[%s344] sm:$0xff] %v678
        %683 = vst [vmem:[%s344 + $0x8] sm:$0xff] %v679
        %684 = vst [vmem:[%s344 + $0x10] sm:$0xff] %v680
        %685 = vst [vmem:[%s344 + $0x18] sm:$0xff] %v681
      $region64: #{supernet_layer.1} parent=39 // pred_fallthru
        _
      %p686 = scmp.eq.s32.totalorder %s21, 2
      %p687 = scmp.eq.s32.totalorder %s22, 1
      %p688 = pnand %p686, %p687
      %p689 = pneg %p688
      %s690 = scalar_select %p689, %s23, 0
      %s691 = smul.u32 4, %s690
      %p692 = scmp.lt.s32.totalorder %s691, 3
      %s693 = scalar_select %p692, %s691, 3
      %s694 = smul.addr %s693, 8
      %s695 = scalar_lea.vmem %s5, %s694
      // Predicated region
      $region65: #{supernet_layer.1} parent=39 // pred_check
        %p696 = pneg %p197
      $region66: #{supernet_layer.1} parent=39 // pred_check_branch
        %698 = sbr.rel (%p696) target = $region68
      $region67: #{supernet_layer.1} parent=39 // pred_region
        %p699 = scmp.eq.s32.totalorder %s21, 2
        %p700 = scmp.eq.s32.totalorder %s22, 1
        %p701 = pnand %p699, %p700
        %p702 = pneg %p701
        %s703 = scalar_select %p702, %s23, 0
        %s704 = smul.u32 4, %s703
      $region68: #{supernet_layer.1} parent=39 // pred_fallthru
        _
    $region40: #{supernet_layer.1} parent=5 // pred_fallthru
      _
    %p705 = scmp.le.s32.totalorder 2, %s11
    // Predicated region
    $region69: #{supernet_layer.1} parent=5 // pred_check
      %p706 = pneg %p705
    $region70: #{supernet_layer.1} parent=5 // pred_check_branch
      %708 = sbr.rel (%p706) target = $region72
    $region71: #{supernet_layer.1} parent=5 // pred_region
      %s709 = ssub.s32 %s11, 2
      // Predicated region
      $region73: #{supernet_layer.1} parent=71 // pred_check
        %p710 = pneg %p203
      $region74: #{supernet_layer.1} parent=71 // pred_check_branch
        %712 = sbr.rel (%p710) target = $region76
      $region75: #{supernet_layer.1} parent=71 // pred_region
        %p713 = scmp.eq.s32.totalorder %s24, 2
        %p714 = scmp.eq.s32.totalorder %s25, 1
        %p715 = pnand %p713, %p714
        %p716 = pneg %p715
        %s717 = scalar_select %p716, %s26, 0
        %s718 = smul.u32 4, %s717
        %p719 = scmp.lt.s32.totalorder %s718, 3
        %s720 = scalar_select %p719, %s718, 3
        %s721 = smul.addr %s720, 8
        %s722 = scalar_lea.vmem %s5, %s721
      $region76: #{supernet_layer.1} parent=71 // pred_fallthru
        _
    $region72: #{supernet_layer.1} parent=5 // pred_fallthru
      _
  $region6: #{supernet_layer.1} parent=0 // loop_footer
    %s15 = sadd.s32 1, %s11
  $region7: #{supernet_layer.1} parent=0 // loop_footer_branch
    %10 = sbr.rel target = $region3
  $region8: #{supernet_layer.1} parent=0 // loop_exit
    _

</llo_original>
